<compile_context>
chip_gen: v7x
topology: tpu7x:2x2x1
jax: 0.10.0
libtpu: 0.0.40
codegen_flags: <defaults>
</compile_context>

<pallas_src>
import jax
import jax.numpy as jnp
from jax.experimental import pallas as pl
from jax.experimental.pallas import tpu as pltpu


def _round_up(n, m):
    return ((n + m - 1) // m) * m


def _cdiv(a, b):
    return -(-a // b)


# ----------------------------------------------------------------------------
# Kernel
# ----------------------------------------------------------------------------
def punn_kernel(x_ref, wt_ref, b_ref, o_ref, logx_ref):
    # Hot path, all in VMEM:
    #   (once per batch tile) clamp -> log (EUP) -> cache in scratch
    #   (every step)          matmul (MXU, f32 acc) -> +bias (VPU) -> exp (EUP)
    @pl.when(pl.program_id(1) == 0)
    def _():
        logx_ref[...] = jnp.log(jnp.maximum(x_ref[...], jnp.float32(1e-6)))

    z = jnp.dot(logx_ref[...], wt_ref[...],            # (TB, K) @ (K, TN)
                preferred_element_type=jnp.float32)
    o_ref[...] = jnp.exp(z + b_ref[...])               # bias broadcast (1, TN)


# ----------------------------------------------------------------------------
# One-time parameter prep (keep OUTSIDE the per-call hot path)
# ----------------------------------------------------------------------------
def prepare_punn_params(weights, biases):
    """Transpose W to (input_dim, output_dim) and zero-pad the output dim to a
    lane-dense multiple of 128.  Padded columns have zero weight & bias, so
    they produce exp(0) = 1 and are sliced off by the wrapper."""
    d_out, d_in = weights.shape
    d_out_p = _round_up(d_out, 128)
    wt = jnp.zeros((d_in, d_out_p), jnp.float32).at[:, :d_out].set(
        weights.astype(jnp.float32).T)
    b2 = jnp.zeros((1, d_out_p), jnp.float32).at[0, :d_out].set(
        biases.astype(jnp.float32))
    return wt, b2


# ----------------------------------------------------------------------------
# Tile / VMEM-budget selection
# ----------------------------------------------------------------------------
def _vmem_budget_bytes():
    cap = 64 * 1024 * 1024           # safe floor: v7x has 64 MiB per TensorCore
    try:
        cap = int(getattr(pltpu.get_tpu_info(), "vmem_capacity_bytes", cap))
    except Exception:
        pass
    return (cap * 3) // 4            # ~75%: leave headroom for Mosaic internals


def _footprint_bytes(tb, tn, d_in):
    # double-buffered x, W^T, bias, out tiles + the f32 log(x) scratch
    return 4 * (2 * tb * d_in + 2 * d_in * tn + 2 * tn + 2 * tb * tn + tb * d_in)


def _choose_tiles(batch, d_in, d_out_p, budget):
    tb_floor = min(256, _round_up(batch, 8))

    # Output tile: whole padded output dim if it fits (n_n = 1 -> W^T resident,
    # x read exactly once); otherwise the largest lane-dense divisor that fits.
    if _footprint_bytes(tb_floor, d_out_p, d_in) <= budget:
        tn = d_out_p
    else:
        tn = 128
        for cand in range(d_out_p, 127, -128):
            if d_out_p % cand == 0 and _footprint_bytes(tb_floor, cand, d_in) <= budget:
                tn = cand
                break

    # Batch-tile cap: biggest that still fits the VMEM budget with this tn.
    max_tb = 8
    for cand in (1024, 512, 256, 128, 64, 32, 16, 8):
        if _footprint_bytes(cand, tn, d_in) <= budget:
            max_tb = cand
            break

    # Minimal-padding batch tiling: n_b (almost) equal tiles, rows padded to 8.
    n_b = _cdiv(batch, max_tb)
    tb = _round_up(_cdiv(batch, n_b), 8)
    b_p = n_b * tb
    n_n = d_out_p // tn
    return tb, tn, n_b, n_n, b_p


# ----------------------------------------------------------------------------
# Forward wrapper
# ----------------------------------------------------------------------------
def punn_forward(x, wt_padded, bias_padded, d_out):
    """x: (B, D_in) f32; wt_padded: (D_in, D_out_p) f32; bias_padded: (1, D_out_p) f32."""
    batch, d_in = x.shape
    d_out_p = wt_padded.shape[1]

    budget = _vmem_budget_bytes()
    tb, tn, n_b, n_n, b_p = _choose_tiles(batch, d_in, d_out_p, budget)

    if b_p != batch:
        # Pad with 1.0 (log(1) = 0) so the throw-away rows stay finite.
        x = jnp.pad(x, ((0, b_p - batch), (0, 0)), constant_values=1.0)

    out_p = pl.pallas_call(
        punn_kernel,
        out_shape=jax.ShapeDtypeStruct((b_p, d_out_p), jnp.float32),
        grid_spec=pltpu.PrefetchScalarGridSpec(
            num_scalar_prefetch=0,
            grid=(n_b, n_n),                                     # batch outer, out-tile inner
            in_specs=[
                pl.BlockSpec((tb, d_in), lambda i, j: (i, 0)),   # x tile (resident over j)
                pl.BlockSpec((d_in, tn), lambda i, j: (0, j)),   # W^T tile
                pl.BlockSpec((1, tn), lambda i, j: (0, j)),      # bias tile
            ],
            out_specs=pl.BlockSpec((tb, tn), lambda i, j: (i, j)),
            scratch_shapes=[pltpu.VMEM((tb, d_in), jnp.float32)],  # cached log(clamp(x))
        ),
        compiler_params=pltpu.CompilerParams(
            dimension_semantics=("parallel", "arbitrary"),
            vmem_limit_bytes=budget,
        ),
    )(x, wt_padded, bias_padded)

    return out_p[:batch, :d_out]


# ----------------------------------------------------------------------------
# Pure-JAX reference + demo
# ----------------------------------------------------------------------------
def punn_reference(x, weights, biases):
    xc = jnp.maximum(x, 1e-6)
    return jnp.exp(jnp.dot(jnp.log(xc), weights.T,
                           precision=jax.lax.Precision.HIGHEST) + biases)


if __name__ == "__main__":
    key = jax.random.PRNGKey(0)
    k_x, k_w, k_b = jax.random.split(key, 3)

    # Small shapes consistent with the module: a dense (batch, input_dim) input.
    batch, input_dim, output_dim = 300, 32, 16

    weights = jax.random.normal(k_w, (output_dim, input_dim), dtype=jnp.float32)
    biases = jax.random.normal(k_b, (output_dim,), dtype=jnp.float32)
    # Positive-ish input (clamp path remains exercised / well-defined).
    x = jnp.abs(jax.random.normal(k_x, (batch, input_dim), dtype=jnp.float32)) + 0.1

    # One-time parameter prep (transpose + lane-dense pad), outside the hot path.
    wt_p, bias_p = prepare_punn_params(weights, biases)

    out = punn_forward(x, wt_p, bias_p, output_dim)
    out = jax.block_until_ready(out)

    ref = punn_reference(x, weights, biases)
    assert out.shape == (batch, output_dim), out.shape
    # exp() amplifies matmul rounding in z, so use a slightly relaxed tolerance.
    max_rel = float(jnp.max(jnp.abs(out - ref) / (jnp.abs(ref) + 1e-6)))
    assert jnp.allclose(out, ref, rtol=2e-3, atol=1e-3), (
        f"mismatch vs reference, max rel err = {max_rel}")

    print("KERNEL_OK")
</pallas_src>

<mosaic_0001>
module attributes {stable_mosaic.version = 11 : i64} {
  func.func @punn_kernel(%arg0: i32, %arg1: i32, %arg2: memref<304x32xf32, #tpu.memory_space<vmem>>, %arg3: memref<32x128xf32, #tpu.memory_space<vmem>>, %arg4: memref<1x128xf32, #tpu.memory_space<vmem>>, %arg5: memref<304x128xf32, #tpu.memory_space<vmem>>, %arg6: memref<304x32xf32, #tpu.memory_space<vmem>>) attributes {dimension_semantics = [#tpu.dimension_semantics<parallel>, #tpu.dimension_semantics<arbitrary>], iteration_bounds = array<i64: 1, 1>, scalar_prefetch = 0 : i64, scratch_operands = 1 : i64, tpu.core_type = #tpu.core_type<tc>, window_params = [{transform_indices = @transform_0, window_bounds = array<i64: 304, 32>}, {transform_indices = @transform_1, window_bounds = array<i64: 32, 128>}, {transform_indices = @transform_2, window_bounds = array<i64: 1, 128>}, {transform_indices = @transform_3, window_bounds = array<i64: 304, 128>}]} {
    %c0_i32 = arith.constant 0 : i32
    %0 = arith.cmpi eq, %arg1, %c0_i32 : i32
    %1 = arith.extui %0 : i1 to i32
    %c0_i32_0 = arith.constant 0 : i32
    %2 = arith.cmpi ne, %1, %c0_i32_0 : i32
    scf.if %2 {
      %c0_8 = arith.constant 0 : index
      %c0_9 = arith.constant 0 : index
      %11 = vector.load %arg2[%c0_8, %c0_9] : memref<304x32xf32, #tpu.memory_space<vmem>>, vector<304x32xf32>
      %cst_10 = arith.constant 9.99999997E-7 : f32
      %12 = vector.broadcast %cst_10 : f32 to vector<304x32xf32>
      %13 = arith.maximumf %11, %12 : vector<304x32xf32>
      %14 = math.log %13 : vector<304x32xf32>
      %c0_11 = arith.constant 0 : index
      %c0_12 = arith.constant 0 : index
      %15 = vector.load %arg6[%c0_11, %c0_12] : memref<304x32xf32, #tpu.memory_space<vmem>>, vector<304x32xf32>
      tpu.vector_store %arg6[%c0_11, %c0_12], %14 {strides = array<i32>} : memref<304x32xf32, #tpu.memory_space<vmem>>, vector<304x32xf32>,
    } else {
    }
    %c0 = arith.constant 0 : index
    %c0_1 = arith.constant 0 : index
    %3 = vector.load %arg6[%c0, %c0_1] : memref<304x32xf32, #tpu.memory_space<vmem>>, vector<304x32xf32>
    %c0_2 = arith.constant 0 : index
    %c0_3 = arith.constant 0 : index
    %4 = vector.load %arg3[%c0_2, %c0_3] : memref<32x128xf32, #tpu.memory_space<vmem>>, vector<32x128xf32>
    %cst = arith.constant dense<0.000000e+00> : vector<304x128xf32>
    %5 = tpu.matmul %3, %4, %cst {dimension_numbers = #tpu.dot_dimension_numbers<[1], [0], [0], [1], [0, 0, 1, 1], [], []>} : vector<304x32xf32>, vector<32x128xf32>, vector<304x128xf32> -> vector<304x128xf32>
    %c0_4 = arith.constant 0 : index
    %c0_5 = arith.constant 0 : index
    %6 = vector.load %arg4[%c0_4, %c0_5] : memref<1x128xf32, #tpu.memory_space<vmem>>, vector<1x128xf32>
    %7 = vector.broadcast %6 : vector<1x128xf32> to vector<304x128xf32>
    %8 = arith.addf %5, %7 : vector<304x128xf32>
    %9 = math.exp %8 : vector<304x128xf32>
    %c0_6 = arith.constant 0 : index
    %c0_7 = arith.constant 0 : index
    %10 = vector.load %arg5[%c0_6, %c0_7] : memref<304x128xf32, #tpu.memory_space<vmem>>, vector<304x128xf32>
    tpu.vector_store %arg5[%c0_6, %c0_7], %9 {strides = array<i32>} : memref<304x128xf32, #tpu.memory_space<vmem>>, vector<304x128xf32>,
    return
  }
  func.func @transform_0(%arg0: i32, %arg1: i32) -> (i32, i32) {
    %c0_i32 = arith.constant 0 : i32
    %c0_i32_0 = arith.constant 0 : i32
    return %arg0, %c0_i32 : i32, i32
  }
  func.func @transform_1(%arg0: i32, %arg1: i32) -> (i32, i32) {
    %c0_i32 = arith.constant 0 : i32
    %c0_i32_0 = arith.constant 0 : i32
    return %c0_i32, %arg1 : i32, i32
  }
  func.func @transform_2(%arg0: i32, %arg1: i32) -> (i32, i32) {
    %c0_i32 = arith.constant 0 : i32
    %c0_i32_0 = arith.constant 0 : i32
    return %c0_i32, %arg1 : i32, i32
  }
  func.func @transform_3(%arg0: i32, %arg1: i32) -> (i32, i32) {
    %c0_i32 = arith.constant 0 : i32
    return %arg0, %arg1 : i32, i32
  }
}

</mosaic_0001>

<llo_original>
// kernel: tpu_custom_call.1
$region0: #{tpu_custom_call.1}
  #allocation0 [shape = 'u32[]', space=smem, size = 0x4, offset = 0x4, fixed_abs, tag = 'smem constant byte address 0x4 - core index']
  #allocation1 [shape = 'u32[144,128]{1,0:T(1,128)}', space=vmem, size = 0x12000, scoped, tag = 'internal scratch']
  #allocation2 [shape = 'f32[304,32]{1,0:T(8,128)}', space=vmem, size = 0x26000, scoped, tag = 'scratch operand']
  %s0 = inlined_call_operand.vmem [shape: f32[304,32], index: 0, kind: input, shape index: {}]
  %s1 = inlined_call_operand.vmem [shape: f32[32,128], index: 1, kind: input, shape index: {}]
  %s2 = inlined_call_operand.vmem [shape: f32[1,128], index: 2, kind: input, shape index: {}]
  %s3 = inlined_call_operand.hbm [shape: f32[304,128], index: 3, kind: output, shape index: {}]
  %s4 = sld [smem:[#allocation0]]
  $region26: #{tpu_custom_call.1} parent=0
    _
  %s6 = ssub.s32 1, %s4
  %s7 = scalar_select 0, %s6, %s4
  $region1: #{tpu_custom_call.1} parent=0
    #allocation3 [shape = 'u8[155648]{0}', space=vmem, size = 0x26000, scoped, tag = 'output window, operand 0, single buffered']
    #allocation4 [shape = 's32[1]{0}', space=sflag, size = 0x4, scoped, tag = 'scoped memory for tpu_custom_call.1']
    %8 = vsyncpa [#allocation4], 0
    // Predicated region
    $region2: #{tpu_custom_call.1} parent=1 // pred_check
      _
    $region3: #{tpu_custom_call.1} parent=1 // pred_check_branch
      %10 = sbr.rel (0) target = $region5
    $region4: #{tpu_custom_call.1} parent=1 // pred_region
      _
    $region5: #{tpu_custom_call.1} parent=1 // pred_fallthru
      _
    // Predicated region
    $region6: #{tpu_custom_call.1} parent=1 // pred_check
      _
    $region7: #{tpu_custom_call.1} parent=1 // pred_check_branch
      %12 = sbr.rel (0) target = $region9
    $region8: #{tpu_custom_call.1} parent=1 // pred_region
      _
    $region9: #{tpu_custom_call.1} parent=1 // pred_fallthru
      _
    // Predicated region
    $region10: #{tpu_custom_call.1} parent=1 // pred_check
      _
    $region11: #{tpu_custom_call.1} parent=1 // pred_check_branch
      %14 = sbr.rel (0) target = $region13
    $region12: #{tpu_custom_call.1} parent=1 // pred_region
      _
    $region13: #{tpu_custom_call.1} parent=1 // pred_fallthru
      _
    %p15 = scmp.eq.s32.totalorder 0, 0
    // Predicated region
    $region14: #{tpu_custom_call.1} parent=1 // pred_check
      %p16 = pneg %p15
    $region15: #{tpu_custom_call.1} parent=1 // pred_check_branch
      %18 = sbr.rel (%p16) target = $region17
    $region16: #{tpu_custom_call.1} parent=1 // pred_region
      %v19 = vld [vmem:[%s0] sm:$0xff]
      %v20 = vld [vmem:[%s0 + $0x8] sm:$0xff]
      %v21 = vld [vmem:[%s0 + $0x10] sm:$0xff]
      %v22 = vld [vmem:[%s0 + $0x18] sm:$0xff]
      %v23 = vld [vmem:[%s0 + $0x20] sm:$0xff]
      %v24 = vld [vmem:[%s0 + $0x28] sm:$0xff]
      %v25 = vld [vmem:[%s0 + $0x30] sm:$0xff]
      %v26 = vld [vmem:[%s0 + $0x38] sm:$0xff]
      %v27 = vld [vmem:[%s0 + $0x40] sm:$0xff]
      %v28 = vld [vmem:[%s0 + $0x48] sm:$0xff]
      %v29 = vld [vmem:[%s0 + $0x50] sm:$0xff]
      %v30 = vld [vmem:[%s0 + $0x58] sm:$0xff]
      %v31 = vld [vmem:[%s0 + $0x60] sm:$0xff]
      %v32 = vld [vmem:[%s0 + $0x68] sm:$0xff]
      %v33 = vld [vmem:[%s0 + $0x70] sm:$0xff]
      %v34 = vld [vmem:[%s0 + $0x78] sm:$0xff]
      %v35 = vld [vmem:[%s0 + $0x80] sm:$0xff]
      %v36 = vld [vmem:[%s0 + $0x88] sm:$0xff]
      %v37 = vld [vmem:[%s0 + $0x90] sm:$0xff]
      %v38 = vld [vmem:[%s0 + $0x98] sm:$0xff]
      %v39 = vld [vmem:[%s0 + $0xa0] sm:$0xff]
      %v40 = vld [vmem:[%s0 + $0xa8] sm:$0xff]
      %v41 = vld [vmem:[%s0 + $0xb0] sm:$0xff]
      %v42 = vld [vmem:[%s0 + $0xb8] sm:$0xff]
      %v43 = vld [vmem:[%s0 + $0xc0] sm:$0xff]
      %v44 = vld [vmem:[%s0 + $0xc8] sm:$0xff]
      %v45 = vld [vmem:[%s0 + $0xd0] sm:$0xff]
      %v46 = vld [vmem:[%s0 + $0xd8] sm:$0xff]
      %v47 = vld [vmem:[%s0 + $0xe0] sm:$0xff]
      %v48 = vld [vmem:[%s0 + $0xe8] sm:$0xff]
      %v49 = vld [vmem:[%s0 + $0xf0] sm:$0xff]
      %v50 = vld [vmem:[%s0 + $0xf8] sm:$0xff]
      %v51 = vld [vmem:[%s0 + $0x100] sm:$0xff]
      %v52 = vld [vmem:[%s0 + $0x108] sm:$0xff]
      %v53 = vld [vmem:[%s0 + $0x110] sm:$0xff]
      %v54 = vld [vmem:[%s0 + $0x118] sm:$0xff]
      %v55 = vld [vmem:[%s0 + $0x120] sm:$0xff]
      %v56 = vld [vmem:[%s0 + $0x128] sm:$0xff]
      %v57 = vmax.f32 %v19, 1e-06
      %v58 = vmax.f32 %v20, 1e-06
      %v59 = vmax.f32 %v21, 1e-06
      %v60 = vmax.f32 %v22, 1e-06
      %v61 = vmax.f32 %v23, 1e-06
      %v62 = vmax.f32 %v24, 1e-06
      %v63 = vmax.f32 %v25, 1e-06
      %v64 = vmax.f32 %v26, 1e-06
      %v65 = vmax.f32 %v27, 1e-06
      %v66 = vmax.f32 %v28, 1e-06
      %v67 = vmax.f32 %v29, 1e-06
      %v68 = vmax.f32 %v30, 1e-06
      %v69 = vmax.f32 %v31, 1e-06
      %v70 = vmax.f32 %v32, 1e-06
      %v71 = vmax.f32 %v33, 1e-06
      %v72 = vmax.f32 %v34, 1e-06
      %v73 = vmax.f32 %v35, 1e-06
      %v74 = vmax.f32 %v36, 1e-06
      %v75 = vmax.f32 %v37, 1e-06
      %v76 = vmax.f32 %v38, 1e-06
      %v77 = vmax.f32 %v39, 1e-06
      %v78 = vmax.f32 %v40, 1e-06
      %v79 = vmax.f32 %v41, 1e-06
      %v80 = vmax.f32 %v42, 1e-06
      %v81 = vmax.f32 %v43, 1e-06
      %v82 = vmax.f32 %v44, 1e-06
      %v83 = vmax.f32 %v45, 1e-06
      %v84 = vmax.f32 %v46, 1e-06
      %v85 = vmax.f32 %v47, 1e-06
      %v86 = vmax.f32 %v48, 1e-06
      %v87 = vmax.f32 %v49, 1e-06
      %v88 = vmax.f32 %v50, 1e-06
      %v89 = vmax.f32 %v51, 1e-06
      %v90 = vmax.f32 %v52, 1e-06
      %v91 = vmax.f32 %v53, 1e-06
      %v92 = vmax.f32 %v54, 1e-06
      %v93 = vmax.f32 %v55, 1e-06
      %v94 = vmax.f32 %v56, 1e-06
      %v95 = vlog2.pop %v57
      %v96 = vmul.f32 %v95, 0.6931472
      %v97 = vlog2.pop %v58
      %v98 = vmul.f32 %v97, 0.6931472
      %v99 = vlog2.pop %v59
      %v100 = vmul.f32 %v99, 0.6931472
      %v101 = vlog2.pop %v60
      %v102 = vmul.f32 %v101, 0.6931472
      %v103 = vlog2.pop %v61
      %v104 = vmul.f32 %v103, 0.6931472
      %v105 = vlog2.pop %v62
      %v106 = vmul.f32 %v105, 0.6931472
      %v107 = vlog2.pop %v63
      %v108 = vmul.f32 %v107, 0.6931472
      %v109 = vlog2.pop %v64
      %v110 = vmul.f32 %v109, 0.6931472
      %v111 = vlog2.pop %v65
      %v112 = vmul.f32 %v111, 0.6931472
      %v113 = vlog2.pop %v66
      %v114 = vmul.f32 %v113, 0.6931472
      %v115 = vlog2.pop %v67
      %v116 = vmul.f32 %v115, 0.6931472
      %v117 = vlog2.pop %v68
      %v118 = vmul.f32 %v117, 0.6931472
      %v119 = vlog2.pop %v69
      %v120 = vmul.f32 %v119, 0.6931472
      %v121 = vlog2.pop %v70
      %v122 = vmul.f32 %v121, 0.6931472
      %v123 = vlog2.pop %v71
      %v124 = vmul.f32 %v123, 0.6931472
      %v125 = vlog2.pop %v72
      %v126 = vmul.f32 %v125, 0.6931472
      %v127 = vlog2.pop %v73
      %v128 = vmul.f32 %v127, 0.6931472
      %v129 = vlog2.pop %v74
      %v130 = vmul.f32 %v129, 0.6931472
      %v131 = vlog2.pop %v75
      %v132 = vmul.f32 %v131, 0.6931472
      %v133 = vlog2.pop %v76
      %v134 = vmul.f32 %v133, 0.6931472
      %v135 = vlog2.pop %v77
      %v136 = vmul.f32 %v135, 0.6931472
      %v137 = vlog2.pop %v78
      %v138 = vmul.f32 %v137, 0.6931472
      %v139 = vlog2.pop %v79
      %v140 = vmul.f32 %v139, 0.6931472
      %v141 = vlog2.pop %v80
      %v142 = vmul.f32 %v141, 0.6931472
      %v143 = vlog2.pop %v81
      %v144 = vmul.f32 %v143, 0.6931472
      %v145 = vlog2.pop %v82
      %v146 = vmul.f32 %v145, 0.6931472
      %v147 = vlog2.pop %v83
      %v148 = vmul.f32 %v147, 0.6931472
      %v149 = vlog2.pop %v84
      %v150 = vmul.f32 %v149, 0.6931472
      %v151 = vlog2.pop %v85
      %v152 = vmul.f32 %v151, 0.6931472
      %v153 = vlog2.pop %v86
      %v154 = vmul.f32 %v153, 0.6931472
      %v155 = vlog2.pop %v87
      %v156 = vmul.f32 %v155, 0.6931472
      %v157 = vlog2.pop %v88
      %v158 = vmul.f32 %v157, 0.6931472
      %v159 = vlog2.pop %v89
      %v160 = vmul.f32 %v159, 0.6931472
      %v161 = vlog2.pop %v90
      %v162 = vmul.f32 %v161, 0.6931472
      %v163 = vlog2.pop %v91
      %v164 = vmul.f32 %v163, 0.6931472
      %v165 = vlog2.pop %v92
      %v166 = vmul.f32 %v165, 0.6931472
      %v167 = vlog2.pop %v93
      %v168 = vmul.f32 %v167, 0.6931472
      %v169 = vlog2.pop %v94
      %v170 = vmul.f32 %v169, 0.6931472
      %vm171 = vcmask 261120
      %172 = vst.msk [vmem:[#allocation2] sm:$0xff] %vm171, %v96
      %173 = vst.msk [vmem:[#allocation2 + $0x8] sm:$0xff] %vm171, %v98
      %174 = vst.msk [vmem:[#allocation2 + $0x10] sm:$0xff] %vm171, %v100
      %175 = vst.msk [vmem:[#allocation2 + $0x18] sm:$0xff] %vm171, %v102
      %176 = vst.msk [vmem:[#allocation2 + $0x20] sm:$0xff] %vm171, %v104
      %177 = vst.msk [vmem:[#allocation2 + $0x28] sm:$0xff] %vm171, %v106
      %178 = vst.msk [vmem:[#allocation2 + $0x30] sm:$0xff] %vm171, %v108
      %179 = vst.msk [vmem:[#allocation2 + $0x38] sm:$0xff] %vm171, %v110
      %180 = vst.msk [vmem:[#allocation2 + $0x40] sm:$0xff] %vm171, %v112
      %181 = vst.msk [vmem:[#allocation2 + $0x48] sm:$0xff] %vm171, %v114
      %182 = vst.msk [vmem:[#allocation2 + $0x50] sm:$0xff] %vm171, %v116
      %183 = vst.msk [vmem:[#allocation2 + $0x58] sm:$0xff] %vm171, %v118
      %184 = vst.msk [vmem:[#allocation2 + $0x60] sm:$0xff] %vm171, %v120
      %185 = vst.msk [vmem:[#allocation2 + $0x68] sm:$0xff] %vm171, %v122
      %186 = vst.msk [vmem:[#allocation2 + $0x70] sm:$0xff] %vm171, %v124
      %187 = vst.msk [vmem:[#allocation2 + $0x78] sm:$0xff] %vm171, %v126
      %188 = vst.msk [vmem:[#allocation2 + $0x80] sm:$0xff] %vm171, %v128
      %189 = vst.msk [vmem:[#allocation2 + $0x88] sm:$0xff] %vm171, %v130
      %190 = vst.msk [vmem:[#allocation2 + $0x90] sm:$0xff] %vm171, %v132
      %191 = vst.msk [vmem:[#allocation2 + $0x98] sm:$0xff] %vm171, %v134
      %192 = vst.msk [vmem:[#allocation2 + $0xa0] sm:$0xff] %vm171, %v136
      %193 = vst.msk [vmem:[#allocation2 + $0xa8] sm:$0xff] %vm171, %v138
      %194 = vst.msk [vmem:[#allocation2 + $0xb0] sm:$0xff] %vm171, %v140
      %195 = vst.msk [vmem:[#allocation2 + $0xb8] sm:$0xff] %vm171, %v142
      %196 = vst.msk [vmem:[#allocation2 + $0xc0] sm:$0xff] %vm171, %v144
      %197 = vst.msk [vmem:[#allocation2 + $0xc8] sm:$0xff] %vm171, %v146
      %198 = vst.msk [vmem:[#allocation2 + $0xd0] sm:$0xff] %vm171, %v148
      %199 = vst.msk [vmem:[#allocation2 + $0xd8] sm:$0xff] %vm171, %v150
      %200 = vst.msk [vmem:[#allocation2 + $0xe0] sm:$0xff] %vm171, %v152
      %201 = vst.msk [vmem:[#allocation2 + $0xe8] sm:$0xff] %vm171, %v154
      %202 = vst.msk [vmem:[#allocation2 + $0xf0] sm:$0xff] %vm171, %v156
      %203 = vst.msk [vmem:[#allocation2 + $0xf8] sm:$0xff] %vm171, %v158
      %204 = vst.msk [vmem:[#allocation2 + $0x100] sm:$0xff] %vm171, %v160
      %205 = vst.msk [vmem:[#allocation2 + $0x108] sm:$0xff] %vm171, %v162
      %206 = vst.msk [vmem:[#allocation2 + $0x110] sm:$0xff] %vm171, %v164
      %207 = vst.msk [vmem:[#allocation2 + $0x118] sm:$0xff] %vm171, %v166
      %208 = vst.msk [vmem:[#allocation2 + $0x120] sm:$0xff] %vm171, %v168
      %209 = vst.msk [vmem:[#allocation2 + $0x128] sm:$0xff] %vm171, %v170
    $region17: #{tpu_custom_call.1} parent=1 // pred_fallthru
      _
    %v210 = vld [vmem:[#allocation2] sm:$0xff]
    %v211 = vld [vmem:[#allocation2 + $0x8] sm:$0xff]
    %v212 = vld [vmem:[#allocation2 + $0x10] sm:$0xff]
    %v213 = vld [vmem:[#allocation2 + $0x18] sm:$0xff]
    %v214 = vld [vmem:[#allocation2 + $0x20] sm:$0xff]
    %v215 = vld [vmem:[#allocation2 + $0x28] sm:$0xff]
    %v216 = vld [vmem:[#allocation2 + $0x30] sm:$0xff]
    %v217 = vld [vmem:[#allocation2 + $0x38] sm:$0xff]
    %v218 = vld [vmem:[#allocation2 + $0x40] sm:$0xff]
    %v219 = vld [vmem:[#allocation2 + $0x48] sm:$0xff]
    %v220 = vld [vmem:[#allocation2 + $0x50] sm:$0xff]
    %v221 = vld [vmem:[#allocation2 + $0x58] sm:$0xff]
    %v222 = vld [vmem:[#allocation2 + $0x60] sm:$0xff]
    %v223 = vld [vmem:[#allocation2 + $0x68] sm:$0xff]
    %v224 = vld [vmem:[#allocation2 + $0x70] sm:$0xff]
    %v225 = vld [vmem:[#allocation2 + $0x78] sm:$0xff]
    %v226 = vld [vmem:[#allocation2 + $0x80] sm:$0xff]
    %v227 = vld [vmem:[#allocation2 + $0x88] sm:$0xff]
    %v228 = vld [vmem:[#allocation2 + $0x90] sm:$0xff]
    %v229 = vld [vmem:[#allocation2 + $0x98] sm:$0xff]
    %v230 = vld [vmem:[#allocation2 + $0xa0] sm:$0xff]
    %v231 = vld [vmem:[#allocation2 + $0xa8] sm:$0xff]
    %v232 = vld [vmem:[#allocation2 + $0xb0] sm:$0xff]
    %v233 = vld [vmem:[#allocation2 + $0xb8] sm:$0xff]
    %v234 = vld [vmem:[#allocation2 + $0xc0] sm:$0xff]
    %v235 = vld [vmem:[#allocation2 + $0xc8] sm:$0xff]
    %v236 = vld [vmem:[#allocation2 + $0xd0] sm:$0xff]
    %v237 = vld [vmem:[#allocation2 + $0xd8] sm:$0xff]
    %v238 = vld [vmem:[#allocation2 + $0xe0] sm:$0xff]
    %v239 = vld [vmem:[#allocation2 + $0xe8] sm:$0xff]
    %v240 = vld [vmem:[#allocation2 + $0xf0] sm:$0xff]
    %v241 = vld [vmem:[#allocation2 + $0xf8] sm:$0xff]
    %v242 = vld [vmem:[#allocation2 + $0x100] sm:$0xff]
    %v243 = vld [vmem:[#allocation2 + $0x108] sm:$0xff]
    %v244 = vld [vmem:[#allocation2 + $0x110] sm:$0xff]
    %v245 = vld [vmem:[#allocation2 + $0x118] sm:$0xff]
    %v246 = vld [vmem:[#allocation2 + $0x120] sm:$0xff]
    %v247 = vld [vmem:[#allocation2 + $0x128] sm:$0xff]
    %v248 = vld [vmem:[%s1] sm:$0xff]
    %v249 = vld [vmem:[%s1 + $0x8] sm:$0xff]
    %v250 = vld [vmem:[%s1 + $0x10] sm:$0xff]
    %v251 = vld [vmem:[%s1 + $0x18] sm:$0xff]
    %v252 = vld [vmem:[%s2] sm:$0x1]
    %v254 = vlaneseq
    %v255 = vshrl.u32 %v254, 7
    %v256 = vsub.s32 0, %v255
    %v257 = vrot.slane %v252, %v256
    %vm259 = vcmask 261120
    %v261 = vsel %vm259, %v210, 0
    %v264 = vsel %vm259, %v211, 0
    %v267 = vsel %vm259, %v212, 0
    %v270 = vsel %vm259, %v213, 0
    %v273 = vsel %vm259, %v214, 0
    %v276 = vsel %vm259, %v215, 0
    %v279 = vsel %vm259, %v216, 0
    %v282 = vsel %vm259, %v217, 0
    %v285 = vsel %vm259, %v218, 0
    %v288 = vsel %vm259, %v219, 0
    %v291 = vsel %vm259, %v220, 0
    %v294 = vsel %vm259, %v221, 0
    %v297 = vsel %vm259, %v222, 0
    %v300 = vsel %vm259, %v223, 0
    %v303 = vsel %vm259, %v224, 0
    %v306 = vsel %vm259, %v225, 0
    %v309 = vsel %vm259, %v226, 0
    %v312 = vsel %vm259, %v227, 0
    %v315 = vsel %vm259, %v228, 0
    %v318 = vsel %vm259, %v229, 0
    %v321 = vsel %vm259, %v230, 0
    %v324 = vsel %vm259, %v231, 0
    %v327 = vsel %vm259, %v232, 0
    %v330 = vsel %vm259, %v233, 0
    %v333 = vsel %vm259, %v234, 0
    %v336 = vsel %vm259, %v235, 0
    %v339 = vsel %vm259, %v236, 0
    %v342 = vsel %vm259, %v237, 0
    %v345 = vsel %vm259, %v238, 0
    %v348 = vsel %vm259, %v239, 0
    %v351 = vsel %vm259, %v240, 0
    %v354 = vsel %vm259, %v241, 0
    %v357 = vsel %vm259, %v242, 0
    %v360 = vsel %vm259, %v243, 0
    %v363 = vsel %vm259, %v244, 0
    %v366 = vsel %vm259, %v245, 0
    %v369 = vsel %vm259, %v246, 0
    %v372 = vsel %vm259, %v247, 0
    %374 = vmatprep.subr.mxu0 0.0
    %375 = vmatpush1.msra.mxu0 %v248
    %376 = vmatprep.subr.mxu0 0.0
    %377 = vmatpush1.msra.mxu0 %v249
    %378 = vmatprep.subr.mxu0 0.0
    %379 = vmatpush1.msra.mxu0 %v250
    %380 = vmatprep.subr.mxu0 0.0
    %381 = vmatpush1.msra.mxu0 %v251
    %382 = vmatprep.subr.mxu0 0.0
    %383 = vmatpush1.msra.mxu0 0.0
    %384 = vmatprep.subr.mxu0 0.0
    %385 = vmatpush1.msra.mxu0 0.0
    %386 = vmatprep.subr.mxu0 0.0
    %387 = vmatpush1.msra.mxu0 0.0
    %388 = vmatprep.subr.mxu0 0.0
    %389 = vmatpush1.msra.mxu0 0.0
    %390 = vmatprep.subr.mxu0 0.0
    %391 = vmatpush1.msra.mxu0 0.0
    %392 = vmatprep.subr.mxu0 0.0
    %393 = vmatpush1.msra.mxu0 0.0
    %394 = vmatprep.subr.mxu0 0.0
    %395 = vmatpush1.msra.mxu0 0.0
    %396 = vmatprep.subr.mxu0 0.0
    %397 = vmatpush1.msra.mxu0 0.0
    %398 = vmatprep.subr.mxu0 0.0
    %399 = vmatpush1.msra.mxu0 0.0
    %400 = vmatprep.subr.mxu0 0.0
    %401 = vmatpush1.msra.mxu0 0.0
    %402 = vmatprep.subr.mxu0 0.0
    %403 = vmatpush1.msra.mxu0 0.0
    %404 = vmatprep.subr.mxu0 0.0
    %405 = vmatpush1.msra.mxu0 0.0
    %406 = vmatprep.subr.mxu0 0.0
    %407 = vmatpush1.msra.mxu0 0.0
    %408 = vmatprep.subr.mxu0 0.0
    %409 = vmatpush1.msra.mxu0 0.0
    %410 = vmatprep.subr.mxu0 0.0
    %411 = vmatpush1.msra.mxu0 0.0
    %412 = vmatprep.subr.mxu0 0.0
    %413 = vmatpush1.msra.mxu0 0.0
    %414 = vmatprep.subr.mxu0 0.0
    %415 = vmatpush1.msra.mxu0 0.0
    %416 = vmatprep.subr.mxu0 0.0
    %417 = vmatpush1.msra.mxu0 0.0
    %418 = vmatprep.subr.mxu0 0.0
    %419 = vmatpush1.msra.mxu0 0.0
    %420 = vmatprep.subr.mxu0 0.0
    %421 = vmatpush1.msra.mxu0 0.0
    %422 = vmatprep.subr.mxu0 0.0
    %423 = vmatpush1.msra.mxu0 0.0
    %424 = vmatprep.subr.mxu0 0.0
    %425 = vmatpush1.msra.mxu0 0.0
    %426 = vmatprep.subr.mxu0 0.0
    %427 = vmatpush1.msra.mxu0 0.0
    %428 = vmatprep.subr.mxu0 0.0
    %429 = vmatpush1.msra.mxu0 0.0
    %430 = vmatprep.subr.mxu0 0.0
    %431 = vmatpush1.msra.mxu0 0.0
    %432 = vmatprep.subr.mxu0 0.0
    %433 = vmatpush1.msra.mxu0 0.0
    %434 = vmatprep.subr.mxu0 0.0
    %435 = vmatpush1.msra.mxu0 0.0
    %436 = vmatprep.subr.mxu0 0.0
    %437 = vmatpush1.msra.mxu0 0.0
    %438 = vmatprep.mubr.f32.mxu0 0.0
    %439 = vmatmul.mubr.f32.gmra.mrb[0].mxu0 %v261
    %v440 = vpop.f32.mrb[0].mxu0
    %v441 = vadd.f32 %v257, %v440
    %v442 = vpop.f32.mrb[0].mxu0
    %443 = vmatprep.mubr.f32.mxu0 0.0
    %444 = vmatmul.mubr.f32.gmra.mrb[0].mxu0 %v264
    %v445 = vpop.f32.mrb[0].mxu0
    %v446 = vadd.f32 %v257, %v445
    %v447 = vpop.f32.mrb[0].mxu0
    %448 = vmatprep.mubr.f32.mxu0 0.0
    %449 = vmatmul.mubr.f32.gmra.mrb[0].mxu0 %v267
    %v450 = vpop.f32.mrb[0].mxu0
    %v451 = vadd.f32 %v257, %v450
    %v452 = vpop.f32.mrb[0].mxu0
    %453 = vmatprep.mubr.f32.mxu0 0.0
    %454 = vmatmul.mubr.f32.gmra.mrb[0].mxu0 %v270
    %v455 = vpop.f32.mrb[0].mxu0
    %v456 = vadd.f32 %v257, %v455
    %v457 = vpop.f32.mrb[0].mxu0
    %458 = vmatprep.mubr.f32.mxu0 0.0
    %459 = vmatmul.mubr.f32.gmra.mrb[0].mxu0 %v273
    %v460 = vpop.f32.mrb[0].mxu0
    %v461 = vadd.f32 %v257, %v460
    %v462 = vpop.f32.mrb[0].mxu0
    %463 = vmatprep.mubr.f32.mxu0 0.0
    %464 = vmatmul.mubr.f32.gmra.mrb[0].mxu0 %v276
    %v465 = vpop.f32.mrb[0].mxu0
    %v466 = vadd.f32 %v257, %v465
    %v467 = vpop.f32.mrb[0].mxu0
    %468 = vmatprep.mubr.f32.mxu0 0.0
    %469 = vmatmul.mubr.f32.gmra.mrb[0].mxu0 %v279
    %v470 = vpop.f32.mrb[0].mxu0
    %v471 = vadd.f32 %v257, %v470
    %v472 = vpop.f32.mrb[0].mxu0
    %473 = vmatprep.mubr.f32.mxu0 0.0
    %474 = vmatmul.mubr.f32.gmra.mrb[0].mxu0 %v282
    %v475 = vpop.f32.mrb[0].mxu0
    %v476 = vadd.f32 %v257, %v475
    %v477 = vpop.f32.mrb[0].mxu0
    %478 = vmatprep.mubr.f32.mxu0 0.0
    %479 = vmatmul.mubr.f32.gmra.mrb[0].mxu0 %v285
    %v480 = vpop.f32.mrb[0].mxu0
    %v481 = vadd.f32 %v257, %v480
    %v482 = vpop.f32.mrb[0].mxu0
    %483 = vmatprep.mubr.f32.mxu0 0.0
    %484 = vmatmul.mubr.f32.gmra.mrb[0].mxu0 %v288
    %v485 = vpop.f32.mrb[0].mxu0
    %v486 = vadd.f32 %v257, %v485
    %v487 = vpop.f32.mrb[0].mxu0
    %488 = vmatprep.mubr.f32.mxu0 0.0
    %489 = vmatmul.mubr.f32.gmra.mrb[0].mxu0 %v291
    %v490 = vpop.f32.mrb[0].mxu0
    %v491 = vadd.f32 %v257, %v490
    %v492 = vpop.f32.mrb[0].mxu0
    %493 = vmatprep.mubr.f32.mxu0 0.0
    %494 = vmatmul.mubr.f32.gmra.mrb[0].mxu0 %v294
    %v495 = vpop.f32.mrb[0].mxu0
    %v496 = vadd.f32 %v257, %v495
    %v497 = vpop.f32.mrb[0].mxu0
    %498 = vmatprep.mubr.f32.mxu0 0.0
    %499 = vmatmul.mubr.f32.gmra.mrb[0].mxu0 %v297
    %v500 = vpop.f32.mrb[0].mxu0
    %v501 = vadd.f32 %v257, %v500
    %v502 = vpop.f32.mrb[0].mxu0
    %503 = vmatprep.mubr.f32.mxu0 0.0
    %504 = vmatmul.mubr.f32.gmra.mrb[0].mxu0 %v300
    %v505 = vpop.f32.mrb[0].mxu0
    %v506 = vadd.f32 %v257, %v505
    %v507 = vpop.f32.mrb[0].mxu0
    %508 = vmatprep.mubr.f32.mxu0 0.0
    %509 = vmatmul.mubr.f32.gmra.mrb[0].mxu0 %v303
    %v510 = vpop.f32.mrb[0].mxu0
    %v511 = vadd.f32 %v257, %v510
    %v512 = vpop.f32.mrb[0].mxu0
    %513 = vmatprep.mubr.f32.mxu0 0.0
    %514 = vmatmul.mubr.f32.gmra.mrb[0].mxu0 %v306
    %v515 = vpop.f32.mrb[0].mxu0
    %v516 = vadd.f32 %v257, %v515
    %v517 = vpop.f32.mrb[0].mxu0
    %518 = vmatprep.mubr.f32.mxu0 0.0
    %519 = vmatmul.mubr.f32.gmra.mrb[0].mxu0 %v309
    %v520 = vpop.f32.mrb[0].mxu0
    %v521 = vadd.f32 %v257, %v520
    %v522 = vpop.f32.mrb[0].mxu0
    %523 = vmatprep.mubr.f32.mxu0 0.0
    %524 = vmatmul.mubr.f32.gmra.mrb[0].mxu0 %v312
    %v525 = vpop.f32.mrb[0].mxu0
    %v526 = vadd.f32 %v257, %v525
    %v527 = vpop.f32.mrb[0].mxu0
    %528 = vmatprep.mubr.f32.mxu0 0.0
    %529 = vmatmul.mubr.f32.gmra.mrb[0].mxu0 %v315
    %v530 = vpop.f32.mrb[0].mxu0
    %v531 = vadd.f32 %v257, %v530
    %v532 = vpop.f32.mrb[0].mxu0
    %533 = vmatprep.mubr.f32.mxu0 0.0
    %534 = vmatmul.mubr.f32.gmra.mrb[0].mxu0 %v318
    %v535 = vpop.f32.mrb[0].mxu0
    %v536 = vadd.f32 %v257, %v535
    %v537 = vpop.f32.mrb[0].mxu0
    %538 = vmatprep.mubr.f32.mxu0 0.0
    %539 = vmatmul.mubr.f32.gmra.mrb[0].mxu0 %v321
    %v540 = vpop.f32.mrb[0].mxu0
    %v541 = vadd.f32 %v257, %v540
    %v542 = vpop.f32.mrb[0].mxu0
    %543 = vmatprep.mubr.f32.mxu0 0.0
    %544 = vmatmul.mubr.f32.gmra.mrb[0].mxu0 %v324
    %v545 = vpop.f32.mrb[0].mxu0
    %v546 = vadd.f32 %v257, %v545
    %v547 = vpop.f32.mrb[0].mxu0
    %548 = vmatprep.mubr.f32.mxu0 0.0
    %549 = vmatmul.mubr.f32.gmra.mrb[0].mxu0 %v327
    %v550 = vpop.f32.mrb[0].mxu0
    %v551 = vadd.f32 %v257, %v550
    %v552 = vpop.f32.mrb[0].mxu0
    %553 = vmatprep.mubr.f32.mxu0 0.0
    %554 = vmatmul.mubr.f32.gmra.mrb[0].mxu0 %v330
    %v555 = vpop.f32.mrb[0].mxu0
    %v556 = vadd.f32 %v257, %v555
    %v557 = vpop.f32.mrb[0].mxu0
    %558 = vmatprep.mubr.f32.mxu0 0.0
    %559 = vmatmul.mubr.f32.gmra.mrb[0].mxu0 %v333
    %v560 = vpop.f32.mrb[0].mxu0
    %v561 = vadd.f32 %v257, %v560
    %v562 = vpop.f32.mrb[0].mxu0
    %563 = vmatprep.mubr.f32.mxu0 0.0
    %564 = vmatmul.mubr.f32.gmra.mrb[0].mxu0 %v336
    %v565 = vpop.f32.mrb[0].mxu0
    %v566 = vadd.f32 %v257, %v565
    %v567 = vpop.f32.mrb[0].mxu0
    %568 = vmatprep.mubr.f32.mxu0 0.0
    %569 = vmatmul.mubr.f32.gmra.mrb[0].mxu0 %v339
    %v570 = vpop.f32.mrb[0].mxu0
    %v571 = vadd.f32 %v257, %v570
    %v572 = vpop.f32.mrb[0].mxu0
    %573 = vmatprep.mubr.f32.mxu0 0.0
    %574 = vmatmul.mubr.f32.gmra.mrb[0].mxu0 %v342
    %v575 = vpop.f32.mrb[0].mxu0
    %v576 = vadd.f32 %v257, %v575
    %v577 = vpop.f32.mrb[0].mxu0
    %578 = vmatprep.mubr.f32.mxu0 0.0
    %579 = vmatmul.mubr.f32.gmra.mrb[0].mxu0 %v345
    %v580 = vpop.f32.mrb[0].mxu0
    %v581 = vadd.f32 %v257, %v580
    %v582 = vpop.f32.mrb[0].mxu0
    %583 = vmatprep.mubr.f32.mxu0 0.0
    %584 = vmatmul.mubr.f32.gmra.mrb[0].mxu0 %v348
    %v585 = vpop.f32.mrb[0].mxu0
    %v586 = vadd.f32 %v257, %v585
    %v587 = vpop.f32.mrb[0].mxu0
    %588 = vmatprep.mubr.f32.mxu0 0.0
    %589 = vmatmul.mubr.f32.gmra.mrb[0].mxu0 %v351
    %v590 = vpop.f32.mrb[0].mxu0
    %v591 = vadd.f32 %v257, %v590
    %v592 = vpop.f32.mrb[0].mxu0
    %593 = vmatprep.mubr.f32.mxu0 0.0
    %594 = vmatmul.mubr.f32.gmra.mrb[0].mxu0 %v354
    %v595 = vpop.f32.mrb[0].mxu0
    %v596 = vadd.f32 %v257, %v595
    %v597 = vpop.f32.mrb[0].mxu0
    %598 = vmatprep.mubr.f32.mxu0 0.0
    %599 = vmatmul.mubr.f32.gmra.mrb[0].mxu0 %v357
    %v600 = vpop.f32.mrb[0].mxu0
    %v601 = vadd.f32 %v257, %v600
    %v602 = vpop.f32.mrb[0].mxu0
    %603 = vmatprep.mubr.f32.mxu0 0.0
    %604 = vmatmul.mubr.f32.gmra.mrb[0].mxu0 %v360
    %v605 = vpop.f32.mrb[0].mxu0
    %v606 = vadd.f32 %v257, %v605
    %v607 = vpop.f32.mrb[0].mxu0
    %608 = vmatprep.mubr.f32.mxu0 0.0
    %609 = vmatmul.mubr.f32.gmra.mrb[0].mxu0 %v363
    %v610 = vpop.f32.mrb[0].mxu0
    %v611 = vadd.f32 %v257, %v610
    %v612 = vpop.f32.mrb[0].mxu0
    %613 = vmatprep.mubr.f32.mxu0 0.0
    %614 = vmatmul.mubr.f32.gmra.mrb[0].mxu0 %v366
    %v615 = vpop.f32.mrb[0].mxu0
    %v616 = vadd.f32 %v257, %v615
    %v617 = vpop.f32.mrb[0].mxu0
    %618 = vmatprep.mubr.f32.mxu0 0.0
    %619 = vmatmul.mubr.f32.gmra.mrb[0].mxu0 %v369
    %v620 = vpop.f32.mrb[0].mxu0
    %v621 = vadd.f32 %v257, %v620
    %v622 = vpop.f32.mrb[0].mxu0
    %623 = vmatprep.mubr.f32.mxu0 0.0
    %624 = vmatmul.mubr.f32.gmra.mrb[0].mxu0 %v372
    %v625 = vpop.f32.mrb[0].mxu0
    %v626 = vadd.f32 %v257, %v625
    %v627 = vpop.f32.mrb[0].mxu0
    %628 = vdwg.mxu0
    %v629 = vmul.f32 %v441, 1.442695
    %v630 = vpow.pop %v629
    %v631 = vmul.f32 %v446, 1.442695
    %v632 = vpow.pop %v631
    %v633 = vmul.f32 %v451, 1.442695
    %v634 = vpow.pop %v633
    %v635 = vmul.f32 %v456, 1.442695
    %v636 = vpow.pop %v635
    %v637 = vmul.f32 %v461, 1.442695
    %v638 = vpow.pop %v637
    %v639 = vmul.f32 %v466, 1.442695
    %v640 = vpow.pop %v639
    %v641 = vmul.f32 %v471, 1.442695
    %v642 = vpow.pop %v641
    %v643 = vmul.f32 %v476, 1.442695
    %v644 = vpow.pop %v643
    %v645 = vmul.f32 %v481, 1.442695
    %v646 = vpow.pop %v645
    %v647 = vmul.f32 %v486, 1.442695
    %v648 = vpow.pop %v647
    %v649 = vmul.f32 %v491, 1.442695
    %v650 = vpow.pop %v649
    %v651 = vmul.f32 %v496, 1.442695
    %v652 = vpow.pop %v651
    %v653 = vmul.f32 %v501, 1.442695
    %v654 = vpow.pop %v653
    %v655 = vmul.f32 %v506, 1.442695
    %v656 = vpow.pop %v655
    %v657 = vmul.f32 %v511, 1.442695
    %v658 = vpow.pop %v657
    %v659 = vmul.f32 %v516, 1.442695
    %v660 = vpow.pop %v659
    %v661 = vmul.f32 %v521, 1.442695
    %v662 = vpow.pop %v661
    %v663 = vmul.f32 %v526, 1.442695
    %v664 = vpow.pop %v663
    %v665 = vmul.f32 %v531, 1.442695
    %v666 = vpow.pop %v665
    %v667 = vmul.f32 %v536, 1.442695
    %v668 = vpow.pop %v667
    %v669 = vmul.f32 %v541, 1.442695
    %v670 = vpow.pop %v669
    %v671 = vmul.f32 %v546, 1.442695
    %v672 = vpow.pop %v671
    %v673 = vmul.f32 %v551, 1.442695
    %v674 = vpow.pop %v673
    %v675 = vmul.f32 %v556, 1.442695
    %v676 = vpow.pop %v675
    %v677 = vmul.f32 %v561, 1.442695
    %v678 = vpow.pop %v677
    %v679 = vmul.f32 %v566, 1.442695
    %v680 = vpow.pop %v679
    %v681 = vmul.f32 %v571, 1.442695
    %v682 = vpow.pop %v681
    %v683 = vmul.f32 %v576, 1.442695
    %v684 = vpow.pop %v683
    %v685 = vmul.f32 %v581, 1.442695
    %v686 = vpow.pop %v685
    %v687 = vmul.f32 %v586, 1.442695
    %v688 = vpow.pop %v687
    %v689 = vmul.f32 %v591, 1.442695
    %v690 = vpow.pop %v689
    %v691 = vmul.f32 %v596, 1.442695
    %v692 = vpow.pop %v691
    %v693 = vmul.f32 %v601, 1.442695
    %v694 = vpow.pop %v693
    %v695 = vmul.f32 %v606, 1.442695
    %v696 = vpow.pop %v695
    %v697 = vmul.f32 %v611, 1.442695
    %v698 = vpow.pop %v697
    %v699 = vmul.f32 %v616, 1.442695
    %v700 = vpow.pop %v699
    %v701 = vmul.f32 %v621, 1.442695
    %v702 = vpow.pop %v701
    %v703 = vmul.f32 %v626, 1.442695
    %v704 = vpow.pop %v703
    %705 = vst [vmem:[#allocation3] sm:$0xff] %v630
    %706 = vst [vmem:[#allocation3 + $0x8] sm:$0xff] %v632
    %707 = vst [vmem:[#allocation3 + $0x10] sm:$0xff] %v634
    %708 = vst [vmem:[#allocation3 + $0x18] sm:$0xff] %v636
    %709 = vst [vmem:[#allocation3 + $0x20] sm:$0xff] %v638
    %710 = vst [vmem:[#allocation3 + $0x28] sm:$0xff] %v640
    %711 = vst [vmem:[#allocation3 + $0x30] sm:$0xff] %v642
    %712 = vst [vmem:[#allocation3 + $0x38] sm:$0xff] %v644
    %713 = vst [vmem:[#allocation3 + $0x40] sm:$0xff] %v646
    %714 = vst [vmem:[#allocation3 + $0x48] sm:$0xff] %v648
    %715 = vst [vmem:[#allocation3 + $0x50] sm:$0xff] %v650
    %716 = vst [vmem:[#allocation3 + $0x58] sm:$0xff] %v652
    %717 = vst [vmem:[#allocation3 + $0x60] sm:$0xff] %v654
    %718 = vst [vmem:[#allocation3 + $0x68] sm:$0xff] %v656
    %719 = vst [vmem:[#allocation3 + $0x70] sm:$0xff] %v658
    %720 = vst [vmem:[#allocation3 + $0x78] sm:$0xff] %v660
    %721 = vst [vmem:[#allocation3 + $0x80] sm:$0xff] %v662
    %722 = vst [vmem:[#allocation3 + $0x88] sm:$0xff] %v664
    %723 = vst [vmem:[#allocation3 + $0x90] sm:$0xff] %v666
    %724 = vst [vmem:[#allocation3 + $0x98] sm:$0xff] %v668
    %725 = vst [vmem:[#allocation3 + $0xa0] sm:$0xff] %v670
    %726 = vst [vmem:[#allocation3 + $0xa8] sm:$0xff] %v672
    %727 = vst [vmem:[#allocation3 + $0xb0] sm:$0xff] %v674
    %728 = vst [vmem:[#allocation3 + $0xb8] sm:$0xff] %v676
    %729 = vst [vmem:[#allocation3 + $0xc0] sm:$0xff] %v678
    %730 = vst [vmem:[#allocation3 + $0xc8] sm:$0xff] %v680
    %731 = vst [vmem:[#allocation3 + $0xd0] sm:$0xff] %v682
    %732 = vst [vmem:[#allocation3 + $0xd8] sm:$0xff] %v684
    %733 = vst [vmem:[#allocation3 + $0xe0] sm:$0xff] %v686
    %734 = vst [vmem:[#allocation3 + $0xe8] sm:$0xff] %v688
    %735 = vst [vmem:[#allocation3 + $0xf0] sm:$0xff] %v690
    %736 = vst [vmem:[#allocation3 + $0xf8] sm:$0xff] %v692
    %737 = vst [vmem:[#allocation3 + $0x100] sm:$0xff] %v694
    %738 = vst [vmem:[#allocation3 + $0x108] sm:$0xff] %v696
    %739 = vst [vmem:[#allocation3 + $0x110] sm:$0xff] %v698
    %740 = vst [vmem:[#allocation3 + $0x118] sm:$0xff] %v700
    %741 = vst [vmem:[#allocation3 + $0x120] sm:$0xff] %v702
    %742 = vst [vmem:[#allocation3 + $0x128] sm:$0xff] %v704
    // Predicated region
    $region18: #{tpu_custom_call.1} parent=1 // pred_check
      _
    $region19: #{tpu_custom_call.1} parent=1 // pred_check_branch
      %744 = sbr.rel (0) target = $region21
    $region20: #{tpu_custom_call.1} parent=1 // pred_region
      %s746 = ssub.s32 4864, 4864
      %747 = vsyncadd [#allocation4], %s746
      %s748 = sshll.u32 [#allocation3], 4
      %s749 = int_to_ptr.vmem [resolvable:$true] %s748
      %754 = dma.vmem_to_hbm [thread:$0]  %s749, 4864, %s3, [#allocation4], 128, 128, 8
    $region21: #{tpu_custom_call.1} parent=1 // pred_fallthru
      _
    // Predicated region
    $region22: #{tpu_custom_call.1} parent=1 // pred_check
      _
    $region23: #{tpu_custom_call.1} parent=1 // pred_check_branch
      %756 = sbr.rel (0) target = $region25
    $region24: #{tpu_custom_call.1} parent=1 // pred_region
      %757 = dma.done [#allocation4], 4864
    $region25: #{tpu_custom_call.1} parent=1 // pred_fallthru
      _
    %758 = vsyncpa [#allocation4], 1

</llo_original>
